<compile_context>
chip_gen: v6e
topology: v6e:2x2x1
jax: 0.10.0
libtpu: 0.0.40
codegen_flags: <defaults>
</compile_context>

<pallas_src>
import jax
import jax.numpy as jnp
from jax.experimental import pallas as pl
from jax.experimental.pallas import tpu as pltpu

# Layer shapes of the PyTorch module: Linear(8,6), Linear(6,4), Linear(4,2), Linear(2,1)
_LAYER_DIMS = [(8, 6), (6, 4), (4, 2), (2, 1)]
_MAX_TILE_ROWS = 65536          # 8*TILE*4 B = 2 MiB/block, double-buffered 4 MiB -> fits v7x easily
_MIN_TILE_ROWS = 1024           # keeps TILE//128 a multiple of 8 (full sublanes)


def mlp_kernel(x_ref, w1, b1, w2, b2, w3, b3, w4, b4, out_ref):
    # x_ref block: (8, sub, 128)  -- feature f lives at x_ref[f], a dense (sub,128) slab
    # (batch spread over sublanes+lanes).  Weights/biases are flat f32 arrays in SMEM.
    h = [x_ref[f] for f in range(8)]  # list of 8 lane/sublane-dense activations

    layer_params = ((w1, b1), (w2, b2), (w3, b3), (w4, b4))
    for (w_ref, b_ref), (in_dim, out_dim) in zip(layer_params, _LAYER_DIMS):
        new_h = []
        for j in range(out_dim):
            # Unrolled VPU FMA over the tiny contraction dim (scalar from SMEM * vreg).
            acc = h[0] * w_ref[j * in_dim + 0]
            for i in range(1, in_dim):
                acc = acc + h[i] * w_ref[j * in_dim + i]
            z = acc + b_ref[j]
            # sigmoid(z) == 0.5 * tanh(0.5 * z) + 0.5  -> single EUP transcendental
            new_h.append(0.5 * jnp.tanh(0.5 * z) + 0.5)
        h = new_h

    out_ref[...] = h[0]  # final layer has a single output feature


def mlp_forward(x, params, tile_rows=None):
    """x: (N, 8) float32; params: list of (W, b) with W shaped (out, in) like torch.nn.Linear."""
    n = x.shape[0]
    if tile_rows is None:
        tile_rows = min(_MAX_TILE_ROWS,
                        ((n + _MIN_TILE_ROWS - 1) // _MIN_TILE_ROWS) * _MIN_TILE_ROWS)
    n_pad = ((n + tile_rows - 1) // tile_rows) * tile_rows
    sub = tile_rows // 128                      # sublane-block rows per grid step
    grid = (n_pad // tile_rows,)

    # Batch-in-lanes layout: (N,8) -> (8, N_pad) -> (8, N_pad//128, 128)
    x32 = jnp.asarray(x, jnp.float32)
    xt = jnp.zeros((8, n_pad), jnp.float32).at[:, :n].set(x32.T)
    xr = xt.reshape(8, n_pad // 128, 128)

    # Flatten weights (row-major: w_flat[j*in + i] = W[j, i]) and biases for SMEM residency.
    flat = []
    for w, b in params:
        flat.append(jnp.asarray(w, jnp.float32).reshape(-1))
        flat.append(jnp.asarray(b, jnp.float32).reshape(-1))

    smem_spec = pl.BlockSpec(memory_space=pltpu.MemorySpace.SMEM)
    out = pl.pallas_call(
        mlp_kernel,
        out_shape=jax.ShapeDtypeStruct((n_pad // 128, 128), jnp.float32),
        grid=grid,
        in_specs=[pl.BlockSpec((8, sub, 128), lambda g: (0, g, 0))] + [smem_spec] * 8,
        out_specs=pl.BlockSpec((sub, 128), lambda g: (g, 0)),
        compiler_params=pltpu.CompilerParams(
            dimension_semantics=("parallel",)),
    )(xr, *flat)

    # (N_pad//128, 128) row-major == flat batch order; slice off padding, restore (N, 1).
    return out.reshape(n_pad)[:n].reshape(n, 1)


def init_params(key):
    """Deterministic init mimicking torch.nn.Linear (uniform +/- 1/sqrt(fan_in))."""
    params = []
    for fan_in, fan_out in _LAYER_DIMS:
        key, kw, kb = jax.random.split(key, 3)
        bound = 1.0 / jnp.sqrt(fan_in)
        w = jax.random.uniform(kw, (fan_out, fan_in), jnp.float32, -bound, bound)
        b = jax.random.uniform(kb, (fan_out,), jnp.float32, -bound, bound)
        params.append((w, b))
    return params


def reference_forward(x, params):
    h = x
    for w, b in params:
        h = jax.nn.sigmoid(h @ w.T + b)
    return h


if __name__ == "__main__":
    key = jax.random.PRNGKey(0)
    key, kx1, kx2 = jax.random.split(key, 3)
    params = init_params(key)

    # Small case consistent with the module: batch=8, 8 input features.
    x_small = jax.random.normal(kx1, (8, 8), jnp.float32)
    out_small = jax.block_until_ready(mlp_forward(x_small, params))
    ref_small = reference_forward(x_small, params)
    assert out_small.shape == (8, 1), out_small.shape
    assert jnp.allclose(out_small, ref_small, atol=1e-5, rtol=1e-5)

    # Multi-tile case to exercise the pipelined batch grid + padding path.
    x_big = jax.random.normal(kx2, (2500, 8), jnp.float32)
    out_big = jax.block_until_ready(mlp_forward(x_big, params))
    ref_big = reference_forward(x_big, params)
    assert out_big.shape == (2500, 1), out_big.shape
    assert jnp.allclose(out_big, ref_big, atol=1e-5, rtol=1e-5)

    print("KERNEL_OK")
</pallas_src>

<mosaic_0001>
module attributes {stable_mosaic.version = 11 : i64} {
  func.func @mlp_kernel(%arg0: i32, %arg1: memref<8x8x128xf32, #tpu.memory_space<vmem>>, %arg2: memref<48xf32, #tpu.memory_space<smem>>, %arg3: memref<6xf32, #tpu.memory_space<smem>>, %arg4: memref<24xf32, #tpu.memory_space<smem>>, %arg5: memref<4xf32, #tpu.memory_space<smem>>, %arg6: memref<8xf32, #tpu.memory_space<smem>>, %arg7: memref<2xf32, #tpu.memory_space<smem>>, %arg8: memref<2xf32, #tpu.memory_space<smem>>, %arg9: memref<1xf32, #tpu.memory_space<smem>>, %arg10: memref<8x128xf32, #tpu.memory_space<vmem>>) attributes {dimension_semantics = [#tpu.dimension_semantics<parallel>], iteration_bounds = array<i64: 1>, scalar_prefetch = 0 : i64, scratch_operands = 0 : i64, tpu.core_type = #tpu.core_type<tc>, window_params = [{transform_indices = @transform_0, window_bounds = array<i64: 8, 8, 128>}, {transform_indices = @transform_1, window_bounds = array<i64: 48>}, {transform_indices = @transform_2, window_bounds = array<i64: 6>}, {transform_indices = @transform_3, window_bounds = array<i64: 24>}, {transform_indices = @transform_4, window_bounds = array<i64: 4>}, {transform_indices = @transform_5, window_bounds = array<i64: 8>}, {transform_indices = @transform_6, window_bounds = array<i64: 2>}, {transform_indices = @transform_7, window_bounds = array<i64: 2>}, {transform_indices = @transform_8, window_bounds = array<i64: 1>}, {transform_indices = @transform_9, window_bounds = array<i64: 8, 128>}]} {
    %c0 = arith.constant 0 : index
    %c0_0 = arith.constant 0 : index
    %c0_1 = arith.constant 0 : index
    %0 = vector.load %arg1[%c0, %c0_0, %c0_1] : memref<8x8x128xf32, #tpu.memory_space<vmem>>, vector<1x8x128xf32>
    %1 = vector.shape_cast %0 : vector<1x8x128xf32> to vector<8x128xf32>
    %c1 = arith.constant 1 : index
    %c0_2 = arith.constant 0 : index
    %c0_3 = arith.constant 0 : index
    %2 = vector.load %arg1[%c1, %c0_2, %c0_3] : memref<8x8x128xf32, #tpu.memory_space<vmem>>, vector<1x8x128xf32>
    %3 = vector.shape_cast %2 : vector<1x8x128xf32> to vector<8x128xf32>
    %c2 = arith.constant 2 : index
    %c0_4 = arith.constant 0 : index
    %c0_5 = arith.constant 0 : index
    %4 = vector.load %arg1[%c2, %c0_4, %c0_5] : memref<8x8x128xf32, #tpu.memory_space<vmem>>, vector<1x8x128xf32>
    %5 = vector.shape_cast %4 : vector<1x8x128xf32> to vector<8x128xf32>
    %c3 = arith.constant 3 : index
    %c0_6 = arith.constant 0 : index
    %c0_7 = arith.constant 0 : index
    %6 = vector.load %arg1[%c3, %c0_6, %c0_7] : memref<8x8x128xf32, #tpu.memory_space<vmem>>, vector<1x8x128xf32>
    %7 = vector.shape_cast %6 : vector<1x8x128xf32> to vector<8x128xf32>
    %c4 = arith.constant 4 : index
    %c0_8 = arith.constant 0 : index
    %c0_9 = arith.constant 0 : index
    %8 = vector.load %arg1[%c4, %c0_8, %c0_9] : memref<8x8x128xf32, #tpu.memory_space<vmem>>, vector<1x8x128xf32>
    %9 = vector.shape_cast %8 : vector<1x8x128xf32> to vector<8x128xf32>
    %c5 = arith.constant 5 : index
    %c0_10 = arith.constant 0 : index
    %c0_11 = arith.constant 0 : index
    %10 = vector.load %arg1[%c5, %c0_10, %c0_11] : memref<8x8x128xf32, #tpu.memory_space<vmem>>, vector<1x8x128xf32>
    %11 = vector.shape_cast %10 : vector<1x8x128xf32> to vector<8x128xf32>
    %c6 = arith.constant 6 : index
    %c0_12 = arith.constant 0 : index
    %c0_13 = arith.constant 0 : index
    %12 = vector.load %arg1[%c6, %c0_12, %c0_13] : memref<8x8x128xf32, #tpu.memory_space<vmem>>, vector<1x8x128xf32>
    %13 = vector.shape_cast %12 : vector<1x8x128xf32> to vector<8x128xf32>
    %c7 = arith.constant 7 : index
    %c0_14 = arith.constant 0 : index
    %c0_15 = arith.constant 0 : index
    %14 = vector.load %arg1[%c7, %c0_14, %c0_15] : memref<8x8x128xf32, #tpu.memory_space<vmem>>, vector<1x8x128xf32>
    %15 = vector.shape_cast %14 : vector<1x8x128xf32> to vector<8x128xf32>
    %c0_16 = arith.constant 0 : index
    %16 = memref.load %arg2[%c0_16] : memref<48xf32, #tpu.memory_space<smem>>
    %17 = vector.broadcast %16 : f32 to vector<8x128xf32>
    %18 = arith.mulf %1, %17 : vector<8x128xf32>
    %c1_17 = arith.constant 1 : index
    %19 = memref.load %arg2[%c1_17] : memref<48xf32, #tpu.memory_space<smem>>
    %20 = vector.broadcast %19 : f32 to vector<8x128xf32>
    %21 = arith.mulf %3, %20 : vector<8x128xf32>
    %22 = arith.addf %18, %21 : vector<8x128xf32>
    %c2_18 = arith.constant 2 : index
    %23 = memref.load %arg2[%c2_18] : memref<48xf32, #tpu.memory_space<smem>>
    %24 = vector.broadcast %23 : f32 to vector<8x128xf32>
    %25 = arith.mulf %5, %24 : vector<8x128xf32>
    %26 = arith.addf %22, %25 : vector<8x128xf32>
    %c3_19 = arith.constant 3 : index
    %27 = memref.load %arg2[%c3_19] : memref<48xf32, #tpu.memory_space<smem>>
    %28 = vector.broadcast %27 : f32 to vector<8x128xf32>
    %29 = arith.mulf %7, %28 : vector<8x128xf32>
    %30 = arith.addf %26, %29 : vector<8x128xf32>
    %c4_20 = arith.constant 4 : index
    %31 = memref.load %arg2[%c4_20] : memref<48xf32, #tpu.memory_space<smem>>
    %32 = vector.broadcast %31 : f32 to vector<8x128xf32>
    %33 = arith.mulf %9, %32 : vector<8x128xf32>
    %34 = arith.addf %30, %33 : vector<8x128xf32>
    %c5_21 = arith.constant 5 : index
    %35 = memref.load %arg2[%c5_21] : memref<48xf32, #tpu.memory_space<smem>>
    %36 = vector.broadcast %35 : f32 to vector<8x128xf32>
    %37 = arith.mulf %11, %36 : vector<8x128xf32>
    %38 = arith.addf %34, %37 : vector<8x128xf32>
    %c6_22 = arith.constant 6 : index
    %39 = memref.load %arg2[%c6_22] : memref<48xf32, #tpu.memory_space<smem>>
    %40 = vector.broadcast %39 : f32 to vector<8x128xf32>
    %41 = arith.mulf %13, %40 : vector<8x128xf32>
    %42 = arith.addf %38, %41 : vector<8x128xf32>
    %c7_23 = arith.constant 7 : index
    %43 = memref.load %arg2[%c7_23] : memref<48xf32, #tpu.memory_space<smem>>
    %44 = vector.broadcast %43 : f32 to vector<8x128xf32>
    %45 = arith.mulf %15, %44 : vector<8x128xf32>
    %46 = arith.addf %42, %45 : vector<8x128xf32>
    %c0_24 = arith.constant 0 : index
    %47 = memref.load %arg3[%c0_24] : memref<6xf32, #tpu.memory_space<smem>>
    %48 = vector.broadcast %47 : f32 to vector<8x128xf32>
    %49 = arith.addf %46, %48 : vector<8x128xf32>
    %cst = arith.constant 5.000000e-01 : f32
    %50 = vector.broadcast %cst : f32 to vector<8x128xf32>
    %51 = arith.mulf %50, %49 : vector<8x128xf32>
    %52 = math.tanh %51 : vector<8x128xf32>
    %cst_25 = arith.constant 5.000000e-01 : f32
    %53 = vector.broadcast %cst_25 : f32 to vector<8x128xf32>
    %54 = arith.mulf %53, %52 : vector<8x128xf32>
    %cst_26 = arith.constant 5.000000e-01 : f32
    %55 = vector.broadcast %cst_26 : f32 to vector<8x128xf32>
    %56 = arith.addf %54, %55 : vector<8x128xf32>
    %c8 = arith.constant 8 : index
    %57 = memref.load %arg2[%c8] : memref<48xf32, #tpu.memory_space<smem>>
    %58 = vector.broadcast %57 : f32 to vector<8x128xf32>
    %59 = arith.mulf %1, %58 : vector<8x128xf32>
    %c9 = arith.constant 9 : index
    %60 = memref.load %arg2[%c9] : memref<48xf32, #tpu.memory_space<smem>>
    %61 = vector.broadcast %60 : f32 to vector<8x128xf32>
    %62 = arith.mulf %3, %61 : vector<8x128xf32>
    %63 = arith.addf %59, %62 : vector<8x128xf32>
    %c10 = arith.constant 10 : index
    %64 = memref.load %arg2[%c10] : memref<48xf32, #tpu.memory_space<smem>>
    %65 = vector.broadcast %64 : f32 to vector<8x128xf32>
    %66 = arith.mulf %5, %65 : vector<8x128xf32>
    %67 = arith.addf %63, %66 : vector<8x128xf32>
    %c11 = arith.constant 11 : index
    %68 = memref.load %arg2[%c11] : memref<48xf32, #tpu.memory_space<smem>>
    %69 = vector.broadcast %68 : f32 to vector<8x128xf32>
    %70 = arith.mulf %7, %69 : vector<8x128xf32>
    %71 = arith.addf %67, %70 : vector<8x128xf32>
    %c12 = arith.constant 12 : index
    %72 = memref.load %arg2[%c12] : memref<48xf32, #tpu.memory_space<smem>>
    %73 = vector.broadcast %72 : f32 to vector<8x128xf32>
    %74 = arith.mulf %9, %73 : vector<8x128xf32>
    %75 = arith.addf %71, %74 : vector<8x128xf32>
    %c13 = arith.constant 13 : index
    %76 = memref.load %arg2[%c13] : memref<48xf32, #tpu.memory_space<smem>>
    %77 = vector.broadcast %76 : f32 to vector<8x128xf32>
    %78 = arith.mulf %11, %77 : vector<8x128xf32>
    %79 = arith.addf %75, %78 : vector<8x128xf32>
    %c14 = arith.constant 14 : index
    %80 = memref.load %arg2[%c14] : memref<48xf32, #tpu.memory_space<smem>>
    %81 = vector.broadcast %80 : f32 to vector<8x128xf32>
    %82 = arith.mulf %13, %81 : vector<8x128xf32>
    %83 = arith.addf %79, %82 : vector<8x128xf32>
    %c15 = arith.constant 15 : index
    %84 = memref.load %arg2[%c15] : memref<48xf32, #tpu.memory_space<smem>>
    %85 = vector.broadcast %84 : f32 to vector<8x128xf32>
    %86 = arith.mulf %15, %85 : vector<8x128xf32>
    %87 = arith.addf %83, %86 : vector<8x128xf32>
    %c1_27 = arith.constant 1 : index
    %88 = memref.load %arg3[%c1_27] : memref<6xf32, #tpu.memory_space<smem>>
    %89 = vector.broadcast %88 : f32 to vector<8x128xf32>
    %90 = arith.addf %87, %89 : vector<8x128xf32>
    %cst_28 = arith.constant 5.000000e-01 : f32
    %91 = vector.broadcast %cst_28 : f32 to vector<8x128xf32>
    %92 = arith.mulf %91, %90 : vector<8x128xf32>
    %93 = math.tanh %92 : vector<8x128xf32>
    %cst_29 = arith.constant 5.000000e-01 : f32
    %94 = vector.broadcast %cst_29 : f32 to vector<8x128xf32>
    %95 = arith.mulf %94, %93 : vector<8x128xf32>
    %cst_30 = arith.constant 5.000000e-01 : f32
    %96 = vector.broadcast %cst_30 : f32 to vector<8x128xf32>
    %97 = arith.addf %95, %96 : vector<8x128xf32>
    %c16 = arith.constant 16 : index
    %98 = memref.load %arg2[%c16] : memref<48xf32, #tpu.memory_space<smem>>
    %99 = vector.broadcast %98 : f32 to vector<8x128xf32>
    %100 = arith.mulf %1, %99 : vector<8x128xf32>
    %c17 = arith.constant 17 : index
    %101 = memref.load %arg2[%c17] : memref<48xf32, #tpu.memory_space<smem>>
    %102 = vector.broadcast %101 : f32 to vector<8x128xf32>
    %103 = arith.mulf %3, %102 : vector<8x128xf32>
    %104 = arith.addf %100, %103 : vector<8x128xf32>
    %c18 = arith.constant 18 : index
    %105 = memref.load %arg2[%c18] : memref<48xf32, #tpu.memory_space<smem>>
    %106 = vector.broadcast %105 : f32 to vector<8x128xf32>
    %107 = arith.mulf %5, %106 : vector<8x128xf32>
    %108 = arith.addf %104, %107 : vector<8x128xf32>
    %c19 = arith.constant 19 : index
    %109 = memref.load %arg2[%c19] : memref<48xf32, #tpu.memory_space<smem>>
    %110 = vector.broadcast %109 : f32 to vector<8x128xf32>
    %111 = arith.mulf %7, %110 : vector<8x128xf32>
    %112 = arith.addf %108, %111 : vector<8x128xf32>
    %c20 = arith.constant 20 : index
    %113 = memref.load %arg2[%c20] : memref<48xf32, #tpu.memory_space<smem>>
    %114 = vector.broadcast %113 : f32 to vector<8x128xf32>
    %115 = arith.mulf %9, %114 : vector<8x128xf32>
    %116 = arith.addf %112, %115 : vector<8x128xf32>
    %c21 = arith.constant 21 : index
    %117 = memref.load %arg2[%c21] : memref<48xf32, #tpu.memory_space<smem>>
    %118 = vector.broadcast %117 : f32 to vector<8x128xf32>
    %119 = arith.mulf %11, %118 : vector<8x128xf32>
    %120 = arith.addf %116, %119 : vector<8x128xf32>
    %c22 = arith.constant 22 : index
    %121 = memref.load %arg2[%c22] : memref<48xf32, #tpu.memory_space<smem>>
    %122 = vector.broadcast %121 : f32 to vector<8x128xf32>
    %123 = arith.mulf %13, %122 : vector<8x128xf32>
    %124 = arith.addf %120, %123 : vector<8x128xf32>
    %c23 = arith.constant 23 : index
    %125 = memref.load %arg2[%c23] : memref<48xf32, #tpu.memory_space<smem>>
    %126 = vector.broadcast %125 : f32 to vector<8x128xf32>
    %127 = arith.mulf %15, %126 : vector<8x128xf32>
    %128 = arith.addf %124, %127 : vector<8x128xf32>
    %c2_31 = arith.constant 2 : index
    %129 = memref.load %arg3[%c2_31] : memref<6xf32, #tpu.memory_space<smem>>
    %130 = vector.broadcast %129 : f32 to vector<8x128xf32>
    %131 = arith.addf %128, %130 : vector<8x128xf32>
    %cst_32 = arith.constant 5.000000e-01 : f32
    %132 = vector.broadcast %cst_32 : f32 to vector<8x128xf32>
    %133 = arith.mulf %132, %131 : vector<8x128xf32>
    %134 = math.tanh %133 : vector<8x128xf32>
    %cst_33 = arith.constant 5.000000e-01 : f32
    %135 = vector.broadcast %cst_33 : f32 to vector<8x128xf32>
    %136 = arith.mulf %135, %134 : vector<8x128xf32>
    %cst_34 = arith.constant 5.000000e-01 : f32
    %137 = vector.broadcast %cst_34 : f32 to vector<8x128xf32>
    %138 = arith.addf %136, %137 : vector<8x128xf32>
    %c24 = arith.constant 24 : index
    %139 = memref.load %arg2[%c24] : memref<48xf32, #tpu.memory_space<smem>>
    %140 = vector.broadcast %139 : f32 to vector<8x128xf32>
    %141 = arith.mulf %1, %140 : vector<8x128xf32>
    %c25 = arith.constant 25 : index
    %142 = memref.load %arg2[%c25] : memref<48xf32, #tpu.memory_space<smem>>
    %143 = vector.broadcast %142 : f32 to vector<8x128xf32>
    %144 = arith.mulf %3, %143 : vector<8x128xf32>
    %145 = arith.addf %141, %144 : vector<8x128xf32>
    %c26 = arith.constant 26 : index
    %146 = memref.load %arg2[%c26] : memref<48xf32, #tpu.memory_space<smem>>
    %147 = vector.broadcast %146 : f32 to vector<8x128xf32>
    %148 = arith.mulf %5, %147 : vector<8x128xf32>
    %149 = arith.addf %145, %148 : vector<8x128xf32>
    %c27 = arith.constant 27 : index
    %150 = memref.load %arg2[%c27] : memref<48xf32, #tpu.memory_space<smem>>
    %151 = vector.broadcast %150 : f32 to vector<8x128xf32>
    %152 = arith.mulf %7, %151 : vector<8x128xf32>
    %153 = arith.addf %149, %152 : vector<8x128xf32>
    %c28 = arith.constant 28 : index
    %154 = memref.load %arg2[%c28] : memref<48xf32, #tpu.memory_space<smem>>
    %155 = vector.broadcast %154 : f32 to vector<8x128xf32>
    %156 = arith.mulf %9, %155 : vector<8x128xf32>
    %157 = arith.addf %153, %156 : vector<8x128xf32>
    %c29 = arith.constant 29 : index
    %158 = memref.load %arg2[%c29] : memref<48xf32, #tpu.memory_space<smem>>
    %159 = vector.broadcast %158 : f32 to vector<8x128xf32>
    %160 = arith.mulf %11, %159 : vector<8x128xf32>
    %161 = arith.addf %157, %160 : vector<8x128xf32>
    %c30 = arith.constant 30 : index
    %162 = memref.load %arg2[%c30] : memref<48xf32, #tpu.memory_space<smem>>
    %163 = vector.broadcast %162 : f32 to vector<8x128xf32>
    %164 = arith.mulf %13, %163 : vector<8x128xf32>
    %165 = arith.addf %161, %164 : vector<8x128xf32>
    %c31 = arith.constant 31 : index
    %166 = memref.load %arg2[%c31] : memref<48xf32, #tpu.memory_space<smem>>
    %167 = vector.broadcast %166 : f32 to vector<8x128xf32>
    %168 = arith.mulf %15, %167 : vector<8x128xf32>
    %169 = arith.addf %165, %168 : vector<8x128xf32>
    %c3_35 = arith.constant 3 : index
    %170 = memref.load %arg3[%c3_35] : memref<6xf32, #tpu.memory_space<smem>>
    %171 = vector.broadcast %170 : f32 to vector<8x128xf32>
    %172 = arith.addf %169, %171 : vector<8x128xf32>
    %cst_36 = arith.constant 5.000000e-01 : f32
    %173 = vector.broadcast %cst_36 : f32 to vector<8x128xf32>
    %174 = arith.mulf %173, %172 : vector<8x128xf32>
    %175 = math.tanh %174 : vector<8x128xf32>
    %cst_37 = arith.constant 5.000000e-01 : f32
    %176 = vector.broadcast %cst_37 : f32 to vector<8x128xf32>
    %177 = arith.mulf %176, %175 : vector<8x128xf32>
    %cst_38 = arith.constant 5.000000e-01 : f32
    %178 = vector.broadcast %cst_38 : f32 to vector<8x128xf32>
    %179 = arith.addf %177, %178 : vector<8x128xf32>
    %c32 = arith.constant 32 : index
    %180 = memref.load %arg2[%c32] : memref<48xf32, #tpu.memory_space<smem>>
    %181 = vector.broadcast %180 : f32 to vector<8x128xf32>
    %182 = arith.mulf %1, %181 : vector<8x128xf32>
    %c33 = arith.constant 33 : index
    %183 = memref.load %arg2[%c33] : memref<48xf32, #tpu.memory_space<smem>>
    %184 = vector.broadcast %183 : f32 to vector<8x128xf32>
    %185 = arith.mulf %3, %184 : vector<8x128xf32>
    %186 = arith.addf %182, %185 : vector<8x128xf32>
    %c34 = arith.constant 34 : index
    %187 = memref.load %arg2[%c34] : memref<48xf32, #tpu.memory_space<smem>>
    %188 = vector.broadcast %187 : f32 to vector<8x128xf32>
    %189 = arith.mulf %5, %188 : vector<8x128xf32>
    %190 = arith.addf %186, %189 : vector<8x128xf32>
    %c35 = arith.constant 35 : index
    %191 = memref.load %arg2[%c35] : memref<48xf32, #tpu.memory_space<smem>>
    %192 = vector.broadcast %191 : f32 to vector<8x128xf32>
    %193 = arith.mulf %7, %192 : vector<8x128xf32>
    %194 = arith.addf %190, %193 : vector<8x128xf32>
    %c36 = arith.constant 36 : index
    %195 = memref.load %arg2[%c36] : memref<48xf32, #tpu.memory_space<smem>>
    %196 = vector.broadcast %195 : f32 to vector<8x128xf32>
    %197 = arith.mulf %9, %196 : vector<8x128xf32>
    %198 = arith.addf %194, %197 : vector<8x128xf32>
    %c37 = arith.constant 37 : index
    %199 = memref.load %arg2[%c37] : memref<48xf32, #tpu.memory_space<smem>>
    %200 = vector.broadcast %199 : f32 to vector<8x128xf32>
    %201 = arith.mulf %11, %200 : vector<8x128xf32>
    %202 = arith.addf %198, %201 : vector<8x128xf32>
    %c38 = arith.constant 38 : index
    %203 = memref.load %arg2[%c38] : memref<48xf32, #tpu.memory_space<smem>>
    %204 = vector.broadcast %203 : f32 to vector<8x128xf32>
    %205 = arith.mulf %13, %204 : vector<8x128xf32>
    %206 = arith.addf %202, %205 : vector<8x128xf32>
    %c39 = arith.constant 39 : index
    %207 = memref.load %arg2[%c39] : memref<48xf32, #tpu.memory_space<smem>>
    %208 = vector.broadcast %207 : f32 to vector<8x128xf32>
    %209 = arith.mulf %15, %208 : vector<8x128xf32>
    %210 = arith.addf %206, %209 : vector<8x128xf32>
    %c4_39 = arith.constant 4 : index
    %211 = memref.load %arg3[%c4_39] : memref<6xf32, #tpu.memory_space<smem>>
    %212 = vector.broadcast %211 : f32 to vector<8x128xf32>
    %213 = arith.addf %210, %212 : vector<8x128xf32>
    %cst_40 = arith.constant 5.000000e-01 : f32
    %214 = vector.broadcast %cst_40 : f32 to vector<8x128xf32>
    %215 = arith.mulf %214, %213 : vector<8x128xf32>
    %216 = math.tanh %215 : vector<8x128xf32>
    %cst_41 = arith.constant 5.000000e-01 : f32
    %217 = vector.broadcast %cst_41 : f32 to vector<8x128xf32>
    %218 = arith.mulf %217, %216 : vector<8x128xf32>
    %cst_42 = arith.constant 5.000000e-01 : f32
    %219 = vector.broadcast %cst_42 : f32 to vector<8x128xf32>
    %220 = arith.addf %218, %219 : vector<8x128xf32>
    %c40 = arith.constant 40 : index
    %221 = memref.load %arg2[%c40] : memref<48xf32, #tpu.memory_space<smem>>
    %222 = vector.broadcast %221 : f32 to vector<8x128xf32>
    %223 = arith.mulf %1, %222 : vector<8x128xf32>
    %c41 = arith.constant 41 : index
    %224 = memref.load %arg2[%c41] : memref<48xf32, #tpu.memory_space<smem>>
    %225 = vector.broadcast %224 : f32 to vector<8x128xf32>
    %226 = arith.mulf %3, %225 : vector<8x128xf32>
    %227 = arith.addf %223, %226 : vector<8x128xf32>
    %c42 = arith.constant 42 : index
    %228 = memref.load %arg2[%c42] : memref<48xf32, #tpu.memory_space<smem>>
    %229 = vector.broadcast %228 : f32 to vector<8x128xf32>
    %230 = arith.mulf %5, %229 : vector<8x128xf32>
    %231 = arith.addf %227, %230 : vector<8x128xf32>
    %c43 = arith.constant 43 : index
    %232 = memref.load %arg2[%c43] : memref<48xf32, #tpu.memory_space<smem>>
    %233 = vector.broadcast %232 : f32 to vector<8x128xf32>
    %234 = arith.mulf %7, %233 : vector<8x128xf32>
    %235 = arith.addf %231, %234 : vector<8x128xf32>
    %c44 = arith.constant 44 : index
    %236 = memref.load %arg2[%c44] : memref<48xf32, #tpu.memory_space<smem>>
    %237 = vector.broadcast %236 : f32 to vector<8x128xf32>
    %238 = arith.mulf %9, %237 : vector<8x128xf32>
    %239 = arith.addf %235, %238 : vector<8x128xf32>
    %c45 = arith.constant 45 : index
    %240 = memref.load %arg2[%c45] : memref<48xf32, #tpu.memory_space<smem>>
    %241 = vector.broadcast %240 : f32 to vector<8x128xf32>
    %242 = arith.mulf %11, %241 : vector<8x128xf32>
    %243 = arith.addf %239, %242 : vector<8x128xf32>
    %c46 = arith.constant 46 : index
    %244 = memref.load %arg2[%c46] : memref<48xf32, #tpu.memory_space<smem>>
    %245 = vector.broadcast %244 : f32 to vector<8x128xf32>
    %246 = arith.mulf %13, %245 : vector<8x128xf32>
    %247 = arith.addf %243, %246 : vector<8x128xf32>
    %c47 = arith.constant 47 : index
    %248 = memref.load %arg2[%c47] : memref<48xf32, #tpu.memory_space<smem>>
    %249 = vector.broadcast %248 : f32 to vector<8x128xf32>
    %250 = arith.mulf %15, %249 : vector<8x128xf32>
    %251 = arith.addf %247, %250 : vector<8x128xf32>
    %c5_43 = arith.constant 5 : index
    %252 = memref.load %arg3[%c5_43] : memref<6xf32, #tpu.memory_space<smem>>
    %253 = vector.broadcast %252 : f32 to vector<8x128xf32>
    %254 = arith.addf %251, %253 : vector<8x128xf32>
    %cst_44 = arith.constant 5.000000e-01 : f32
    %255 = vector.broadcast %cst_44 : f32 to vector<8x128xf32>
    %256 = arith.mulf %255, %254 : vector<8x128xf32>
    %257 = math.tanh %256 : vector<8x128xf32>
    %cst_45 = arith.constant 5.000000e-01 : f32
    %258 = vector.broadcast %cst_45 : f32 to vector<8x128xf32>
    %259 = arith.mulf %258, %257 : vector<8x128xf32>
    %cst_46 = arith.constant 5.000000e-01 : f32
    %260 = vector.broadcast %cst_46 : f32 to vector<8x128xf32>
    %261 = arith.addf %259, %260 : vector<8x128xf32>
    %c0_47 = arith.constant 0 : index
    %262 = memref.load %arg4[%c0_47] : memref<24xf32, #tpu.memory_space<smem>>
    %263 = vector.broadcast %262 : f32 to vector<8x128xf32>
    %264 = arith.mulf %56, %263 : vector<8x128xf32>
    %c1_48 = arith.constant 1 : index
    %265 = memref.load %arg4[%c1_48] : memref<24xf32, #tpu.memory_space<smem>>
    %266 = vector.broadcast %265 : f32 to vector<8x128xf32>
    %267 = arith.mulf %97, %266 : vector<8x128xf32>
    %268 = arith.addf %264, %267 : vector<8x128xf32>
    %c2_49 = arith.constant 2 : index
    %269 = memref.load %arg4[%c2_49] : memref<24xf32, #tpu.memory_space<smem>>
    %270 = vector.broadcast %269 : f32 to vector<8x128xf32>
    %271 = arith.mulf %138, %270 : vector<8x128xf32>
    %272 = arith.addf %268, %271 : vector<8x128xf32>
    %c3_50 = arith.constant 3 : index
    %273 = memref.load %arg4[%c3_50] : memref<24xf32, #tpu.memory_space<smem>>
    %274 = vector.broadcast %273 : f32 to vector<8x128xf32>
    %275 = arith.mulf %179, %274 : vector<8x128xf32>
    %276 = arith.addf %272, %275 : vector<8x128xf32>
    %c4_51 = arith.constant 4 : index
    %277 = memref.load %arg4[%c4_51] : memref<24xf32, #tpu.memory_space<smem>>
    %278 = vector.broadcast %277 : f32 to vector<8x128xf32>
    %279 = arith.mulf %220, %278 : vector<8x128xf32>
    %280 = arith.addf %276, %279 : vector<8x128xf32>
    %c5_52 = arith.constant 5 : index
    %281 = memref.load %arg4[%c5_52] : memref<24xf32, #tpu.memory_space<smem>>
    %282 = vector.broadcast %281 : f32 to vector<8x128xf32>
    %283 = arith.mulf %261, %282 : vector<8x128xf32>
    %284 = arith.addf %280, %283 : vector<8x128xf32>
    %c0_53 = arith.constant 0 : index
    %285 = memref.load %arg5[%c0_53] : memref<4xf32, #tpu.memory_space<smem>>
    %286 = vector.broadcast %285 : f32 to vector<8x128xf32>
    %287 = arith.addf %284, %286 : vector<8x128xf32>
    %cst_54 = arith.constant 5.000000e-01 : f32
    %288 = vector.broadcast %cst_54 : f32 to vector<8x128xf32>
    %289 = arith.mulf %288, %287 : vector<8x128xf32>
    %290 = math.tanh %289 : vector<8x128xf32>
    %cst_55 = arith.constant 5.000000e-01 : f32
    %291 = vector.broadcast %cst_55 : f32 to vector<8x128xf32>
    %292 = arith.mulf %291, %290 : vector<8x128xf32>
    %cst_56 = arith.constant 5.000000e-01 : f32
    %293 = vector.broadcast %cst_56 : f32 to vector<8x128xf32>
    %294 = arith.addf %292, %293 : vector<8x128xf32>
    %c6_57 = arith.constant 6 : index
    %295 = memref.load %arg4[%c6_57] : memref<24xf32, #tpu.memory_space<smem>>
    %296 = vector.broadcast %295 : f32 to vector<8x128xf32>
    %297 = arith.mulf %56, %296 : vector<8x128xf32>
    %c7_58 = arith.constant 7 : index
    %298 = memref.load %arg4[%c7_58] : memref<24xf32, #tpu.memory_space<smem>>
    %299 = vector.broadcast %298 : f32 to vector<8x128xf32>
    %300 = arith.mulf %97, %299 : vector<8x128xf32>
    %301 = arith.addf %297, %300 : vector<8x128xf32>
    %c8_59 = arith.constant 8 : index
    %302 = memref.load %arg4[%c8_59] : memref<24xf32, #tpu.memory_space<smem>>
    %303 = vector.broadcast %302 : f32 to vector<8x128xf32>
    %304 = arith.mulf %138, %303 : vector<8x128xf32>
    %305 = arith.addf %301, %304 : vector<8x128xf32>
    %c9_60 = arith.constant 9 : index
    %306 = memref.load %arg4[%c9_60] : memref<24xf32, #tpu.memory_space<smem>>
    %307 = vector.broadcast %306 : f32 to vector<8x128xf32>
    %308 = arith.mulf %179, %307 : vector<8x128xf32>
    %309 = arith.addf %305, %308 : vector<8x128xf32>
    %c10_61 = arith.constant 10 : index
    %310 = memref.load %arg4[%c10_61] : memref<24xf32, #tpu.memory_space<smem>>
    %311 = vector.broadcast %310 : f32 to vector<8x128xf32>
    %312 = arith.mulf %220, %311 : vector<8x128xf32>
    %313 = arith.addf %309, %312 : vector<8x128xf32>
    %c11_62 = arith.constant 11 : index
    %314 = memref.load %arg4[%c11_62] : memref<24xf32, #tpu.memory_space<smem>>
    %315 = vector.broadcast %314 : f32 to vector<8x128xf32>
    %316 = arith.mulf %261, %315 : vector<8x128xf32>
    %317 = arith.addf %313, %316 : vector<8x128xf32>
    %c1_63 = arith.constant 1 : index
    %318 = memref.load %arg5[%c1_63] : memref<4xf32, #tpu.memory_space<smem>>
    %319 = vector.broadcast %318 : f32 to vector<8x128xf32>
    %320 = arith.addf %317, %319 : vector<8x128xf32>
    %cst_64 = arith.constant 5.000000e-01 : f32
    %321 = vector.broadcast %cst_64 : f32 to vector<8x128xf32>
    %322 = arith.mulf %321, %320 : vector<8x128xf32>
    %323 = math.tanh %322 : vector<8x128xf32>
    %cst_65 = arith.constant 5.000000e-01 : f32
    %324 = vector.broadcast %cst_65 : f32 to vector<8x128xf32>
    %325 = arith.mulf %324, %323 : vector<8x128xf32>
    %cst_66 = arith.constant 5.000000e-01 : f32
    %326 = vector.broadcast %cst_66 : f32 to vector<8x128xf32>
    %327 = arith.addf %325, %326 : vector<8x128xf32>
    %c12_67 = arith.constant 12 : index
    %328 = memref.load %arg4[%c12_67] : memref<24xf32, #tpu.memory_space<smem>>
    %329 = vector.broadcast %328 : f32 to vector<8x128xf32>
    %330 = arith.mulf %56, %329 : vector<8x128xf32>
    %c13_68 = arith.constant 13 : index
    %331 = memref.load %arg4[%c13_68] : memref<24xf32, #tpu.memory_space<smem>>
    %332 = vector.broadcast %331 : f32 to vector<8x128xf32>
    %333 = arith.mulf %97, %332 : vector<8x128xf32>
    %334 = arith.addf %330, %333 : vector<8x128xf32>
    %c14_69 = arith.constant 14 : index
    %335 = memref.load %arg4[%c14_69] : memref<24xf32, #tpu.memory_space<smem>>
    %336 = vector.broadcast %335 : f32 to vector<8x128xf32>
    %337 = arith.mulf %138, %336 : vector<8x128xf32>
    %338 = arith.addf %334, %337 : vector<8x128xf32>
    %c15_70 = arith.constant 15 : index
    %339 = memref.load %arg4[%c15_70] : memref<24xf32, #tpu.memory_space<smem>>
    %340 = vector.broadcast %339 : f32 to vector<8x128xf32>
    %341 = arith.mulf %179, %340 : vector<8x128xf32>
    %342 = arith.addf %338, %341 : vector<8x128xf32>
    %c16_71 = arith.constant 16 : index
    %343 = memref.load %arg4[%c16_71] : memref<24xf32, #tpu.memory_space<smem>>
    %344 = vector.broadcast %343 : f32 to vector<8x128xf32>
    %345 = arith.mulf %220, %344 : vector<8x128xf32>
    %346 = arith.addf %342, %345 : vector<8x128xf32>
    %c17_72 = arith.constant 17 : index
    %347 = memref.load %arg4[%c17_72] : memref<24xf32, #tpu.memory_space<smem>>
    %348 = vector.broadcast %347 : f32 to vector<8x128xf32>
    %349 = arith.mulf %261, %348 : vector<8x128xf32>
    %350 = arith.addf %346, %349 : vector<8x128xf32>
    %c2_73 = arith.constant 2 : index
    %351 = memref.load %arg5[%c2_73] : memref<4xf32, #tpu.memory_space<smem>>
    %352 = vector.broadcast %351 : f32 to vector<8x128xf32>
    %353 = arith.addf %350, %352 : vector<8x128xf32>
    %cst_74 = arith.constant 5.000000e-01 : f32
    %354 = vector.broadcast %cst_74 : f32 to vector<8x128xf32>
    %355 = arith.mulf %354, %353 : vector<8x128xf32>
    %356 = math.tanh %355 : vector<8x128xf32>
    %cst_75 = arith.constant 5.000000e-01 : f32
    %357 = vector.broadcast %cst_75 : f32 to vector<8x128xf32>
    %358 = arith.mulf %357, %356 : vector<8x128xf32>
    %cst_76 = arith.constant 5.000000e-01 : f32
    %359 = vector.broadcast %cst_76 : f32 to vector<8x128xf32>
    %360 = arith.addf %358, %359 : vector<8x128xf32>
    %c18_77 = arith.constant 18 : index
    %361 = memref.load %arg4[%c18_77] : memref<24xf32, #tpu.memory_space<smem>>
    %362 = vector.broadcast %361 : f32 to vector<8x128xf32>
    %363 = arith.mulf %56, %362 : vector<8x128xf32>
    %c19_78 = arith.constant 19 : index
    %364 = memref.load %arg4[%c19_78] : memref<24xf32, #tpu.memory_space<smem>>
    %365 = vector.broadcast %364 : f32 to vector<8x128xf32>
    %366 = arith.mulf %97, %365 : vector<8x128xf32>
    %367 = arith.addf %363, %366 : vector<8x128xf32>
    %c20_79 = arith.constant 20 : index
    %368 = memref.load %arg4[%c20_79] : memref<24xf32, #tpu.memory_space<smem>>
    %369 = vector.broadcast %368 : f32 to vector<8x128xf32>
    %370 = arith.mulf %138, %369 : vector<8x128xf32>
    %371 = arith.addf %367, %370 : vector<8x128xf32>
    %c21_80 = arith.constant 21 : index
    %372 = memref.load %arg4[%c21_80] : memref<24xf32, #tpu.memory_space<smem>>
    %373 = vector.broadcast %372 : f32 to vector<8x128xf32>
    %374 = arith.mulf %179, %373 : vector<8x128xf32>
    %375 = arith.addf %371, %374 : vector<8x128xf32>
    %c22_81 = arith.constant 22 : index
    %376 = memref.load %arg4[%c22_81] : memref<24xf32, #tpu.memory_space<smem>>
    %377 = vector.broadcast %376 : f32 to vector<8x128xf32>
    %378 = arith.mulf %220, %377 : vector<8x128xf32>
    %379 = arith.addf %375, %378 : vector<8x128xf32>
    %c23_82 = arith.constant 23 : index
    %380 = memref.load %arg4[%c23_82] : memref<24xf32, #tpu.memory_space<smem>>
    %381 = vector.broadcast %380 : f32 to vector<8x128xf32>
    %382 = arith.mulf %261, %381 : vector<8x128xf32>
    %383 = arith.addf %379, %382 : vector<8x128xf32>
    %c3_83 = arith.constant 3 : index
    %384 = memref.load %arg5[%c3_83] : memref<4xf32, #tpu.memory_space<smem>>
    %385 = vector.broadcast %384 : f32 to vector<8x128xf32>
    %386 = arith.addf %383, %385 : vector<8x128xf32>
    %cst_84 = arith.constant 5.000000e-01 : f32
    %387 = vector.broadcast %cst_84 : f32 to vector<8x128xf32>
    %388 = arith.mulf %387, %386 : vector<8x128xf32>
    %389 = math.tanh %388 : vector<8x128xf32>
    %cst_85 = arith.constant 5.000000e-01 : f32
    %390 = vector.broadcast %cst_85 : f32 to vector<8x128xf32>
    %391 = arith.mulf %390, %389 : vector<8x128xf32>
    %cst_86 = arith.constant 5.000000e-01 : f32
    %392 = vector.broadcast %cst_86 : f32 to vector<8x128xf32>
    %393 = arith.addf %391, %392 : vector<8x128xf32>
    %c0_87 = arith.constant 0 : index
    %394 = memref.load %arg6[%c0_87] : memref<8xf32, #tpu.memory_space<smem>>
    %395 = vector.broadcast %394 : f32 to vector<8x128xf32>
    %396 = arith.mulf %294, %395 : vector<8x128xf32>
    %c1_88 = arith.constant 1 : index
    %397 = memref.load %arg6[%c1_88] : memref<8xf32, #tpu.memory_space<smem>>
    %398 = vector.broadcast %397 : f32 to vector<8x128xf32>
    %399 = arith.mulf %327, %398 : vector<8x128xf32>
    %400 = arith.addf %396, %399 : vector<8x128xf32>
    %c2_89 = arith.constant 2 : index
    %401 = memref.load %arg6[%c2_89] : memref<8xf32, #tpu.memory_space<smem>>
    %402 = vector.broadcast %401 : f32 to vector<8x128xf32>
    %403 = arith.mulf %360, %402 : vector<8x128xf32>
    %404 = arith.addf %400, %403 : vector<8x128xf32>
    %c3_90 = arith.constant 3 : index
    %405 = memref.load %arg6[%c3_90] : memref<8xf32, #tpu.memory_space<smem>>
    %406 = vector.broadcast %405 : f32 to vector<8x128xf32>
    %407 = arith.mulf %393, %406 : vector<8x128xf32>
    %408 = arith.addf %404, %407 : vector<8x128xf32>
    %c0_91 = arith.constant 0 : index
    %409 = memref.load %arg7[%c0_91] : memref<2xf32, #tpu.memory_space<smem>>
    %410 = vector.broadcast %409 : f32 to vector<8x128xf32>
    %411 = arith.addf %408, %410 : vector<8x128xf32>
    %cst_92 = arith.constant 5.000000e-01 : f32
    %412 = vector.broadcast %cst_92 : f32 to vector<8x128xf32>
    %413 = arith.mulf %412, %411 : vector<8x128xf32>
    %414 = math.tanh %413 : vector<8x128xf32>
    %cst_93 = arith.constant 5.000000e-01 : f32
    %415 = vector.broadcast %cst_93 : f32 to vector<8x128xf32>
    %416 = arith.mulf %415, %414 : vector<8x128xf32>
    %cst_94 = arith.constant 5.000000e-01 : f32
    %417 = vector.broadcast %cst_94 : f32 to vector<8x128xf32>
    %418 = arith.addf %416, %417 : vector<8x128xf32>
    %c4_95 = arith.constant 4 : index
    %419 = memref.load %arg6[%c4_95] : memref<8xf32, #tpu.memory_space<smem>>
    %420 = vector.broadcast %419 : f32 to vector<8x128xf32>
    %421 = arith.mulf %294, %420 : vector<8x128xf32>
    %c5_96 = arith.constant 5 : index
    %422 = memref.load %arg6[%c5_96] : memref<8xf32, #tpu.memory_space<smem>>
    %423 = vector.broadcast %422 : f32 to vector<8x128xf32>
    %424 = arith.mulf %327, %423 : vector<8x128xf32>
    %425 = arith.addf %421, %424 : vector<8x128xf32>
    %c6_97 = arith.constant 6 : index
    %426 = memref.load %arg6[%c6_97] : memref<8xf32, #tpu.memory_space<smem>>
    %427 = vector.broadcast %426 : f32 to vector<8x128xf32>
    %428 = arith.mulf %360, %427 : vector<8x128xf32>
    %429 = arith.addf %425, %428 : vector<8x128xf32>
    %c7_98 = arith.constant 7 : index
    %430 = memref.load %arg6[%c7_98] : memref<8xf32, #tpu.memory_space<smem>>
    %431 = vector.broadcast %430 : f32 to vector<8x128xf32>
    %432 = arith.mulf %393, %431 : vector<8x128xf32>
    %433 = arith.addf %429, %432 : vector<8x128xf32>
    %c1_99 = arith.constant 1 : index
    %434 = memref.load %arg7[%c1_99] : memref<2xf32, #tpu.memory_space<smem>>
    %435 = vector.broadcast %434 : f32 to vector<8x128xf32>
    %436 = arith.addf %433, %435 : vector<8x128xf32>
    %cst_100 = arith.constant 5.000000e-01 : f32
    %437 = vector.broadcast %cst_100 : f32 to vector<8x128xf32>
    %438 = arith.mulf %437, %436 : vector<8x128xf32>
    %439 = math.tanh %438 : vector<8x128xf32>
    %cst_101 = arith.constant 5.000000e-01 : f32
    %440 = vector.broadcast %cst_101 : f32 to vector<8x128xf32>
    %441 = arith.mulf %440, %439 : vector<8x128xf32>
    %cst_102 = arith.constant 5.000000e-01 : f32
    %442 = vector.broadcast %cst_102 : f32 to vector<8x128xf32>
    %443 = arith.addf %441, %442 : vector<8x128xf32>
    %c0_103 = arith.constant 0 : index
    %444 = memref.load %arg8[%c0_103] : memref<2xf32, #tpu.memory_space<smem>>
    %445 = vector.broadcast %444 : f32 to vector<8x128xf32>
    %446 = arith.mulf %418, %445 : vector<8x128xf32>
    %c1_104 = arith.constant 1 : index
    %447 = memref.load %arg8[%c1_104] : memref<2xf32, #tpu.memory_space<smem>>
    %448 = vector.broadcast %447 : f32 to vector<8x128xf32>
    %449 = arith.mulf %443, %448 : vector<8x128xf32>
    %450 = arith.addf %446, %449 : vector<8x128xf32>
    %c0_105 = arith.constant 0 : index
    %451 = memref.load %arg9[%c0_105] : memref<1xf32, #tpu.memory_space<smem>>
    %452 = vector.broadcast %451 : f32 to vector<8x128xf32>
    %453 = arith.addf %450, %452 : vector<8x128xf32>
    %cst_106 = arith.constant 5.000000e-01 : f32
    %454 = vector.broadcast %cst_106 : f32 to vector<8x128xf32>
    %455 = arith.mulf %454, %453 : vector<8x128xf32>
    %456 = math.tanh %455 : vector<8x128xf32>
    %cst_107 = arith.constant 5.000000e-01 : f32
    %457 = vector.broadcast %cst_107 : f32 to vector<8x128xf32>
    %458 = arith.mulf %457, %456 : vector<8x128xf32>
    %cst_108 = arith.constant 5.000000e-01 : f32
    %459 = vector.broadcast %cst_108 : f32 to vector<8x128xf32>
    %460 = arith.addf %458, %459 : vector<8x128xf32>
    %c0_109 = arith.constant 0 : index
    %c0_110 = arith.constant 0 : index
    %461 = vector.load %arg10[%c0_109, %c0_110] : memref<8x128xf32, #tpu.memory_space<vmem>>, vector<8x128xf32>
    tpu.vector_store %arg10[%c0_109, %c0_110], %460 {strides = array<i32>} : memref<8x128xf32, #tpu.memory_space<vmem>>, vector<8x128xf32>,
    return
  }
  func.func @transform_0(%arg0: i32) -> (i32, i32, i32) {
    %c0_i32 = arith.constant 0 : i32
    %c0_i32_0 = arith.constant 0 : i32
    %c0_i32_1 = arith.constant 0 : i32
    return %c0_i32, %arg0, %c0_i32_0 : i32, i32, i32
  }
  func.func @transform_1(%arg0: i32) -> i32 {
    %c0_i32 = arith.constant 0 : i32
    %c0_i32_0 = arith.constant 0 : i32
    return %c0_i32 : i32
  }
  func.func @transform_2(%arg0: i32) -> i32 {
    %c0_i32 = arith.constant 0 : i32
    %c0_i32_0 = arith.constant 0 : i32
    return %c0_i32 : i32
  }
  func.func @transform_3(%arg0: i32) -> i32 {
    %c0_i32 = arith.constant 0 : i32
    %c0_i32_0 = arith.constant 0 : i32
    return %c0_i32 : i32
  }
  func.func @transform_4(%arg0: i32) -> i32 {
    %c0_i32 = arith.constant 0 : i32
    %c0_i32_0 = arith.constant 0 : i32
    return %c0_i32 : i32
  }
  func.func @transform_5(%arg0: i32) -> i32 {
    %c0_i32 = arith.constant 0 : i32
    %c0_i32_0 = arith.constant 0 : i32
    return %c0_i32 : i32
  }
  func.func @transform_6(%arg0: i32) -> i32 {
    %c0_i32 = arith.constant 0 : i32
    %c0_i32_0 = arith.constant 0 : i32
    return %c0_i32 : i32
  }
  func.func @transform_7(%arg0: i32) -> i32 {
    %c0_i32 = arith.constant 0 : i32
    %c0_i32_0 = arith.constant 0 : i32
    return %c0_i32 : i32
  }
  func.func @transform_8(%arg0: i32) -> i32 {
    %c0_i32 = arith.constant 0 : i32
    %c0_i32_0 = arith.constant 0 : i32
    return %c0_i32 : i32
  }
  func.func @transform_9(%arg0: i32) -> (i32, i32) {
    %c0_i32 = arith.constant 0 : i32
    %c0_i32_0 = arith.constant 0 : i32
    return %arg0, %c0_i32 : i32, i32
  }
}

</mosaic_0001>

<llo_original>
// kernel: tpu_custom_call.1
$region0: #{tpu_custom_call.1}
  #allocation0 [shape = 'u32[]', space=smem, size = 0x4, offset = 0x4, fixed_abs, tag = 'smem constant byte address 0x4 - core index']
  #allocation1 [shape = 'u32[144,128]{1,0:T(1,128)}', space=vmem, size = 0x12000, scoped, tag = 'internal scratch']
  #allocation2 [shape = 'f32[1]{0:T(128)S(6)}', space=smem, size = 0x200, scoped, tag = 'scoped memory for tpu_custom_call.1']
  %s0 = inlined_call_operand.hbm [shape: f32[8,8,128], index: 0, kind: input, shape index: {}]
  %s1 = inlined_call_operand.vmem [shape: f32[48], index: 1, kind: input, shape index: {}]
  %s2 = inlined_call_operand.vmem [shape: f32[6], index: 2, kind: input, shape index: {}]
  %s3 = inlined_call_operand.vmem [shape: f32[24], index: 3, kind: input, shape index: {}]
  %s4 = inlined_call_operand.vmem [shape: f32[4], index: 4, kind: input, shape index: {}]
  %s5 = inlined_call_operand.vmem [shape: f32[8], index: 5, kind: input, shape index: {}]
  %s6 = inlined_call_operand.vmem [shape: f32[2], index: 6, kind: input, shape index: {}]
  %s7 = inlined_call_operand.vmem [shape: f32[2], index: 7, kind: input, shape index: {}]
  %s8 = inlined_call_operand.<no memory space> [shape: f32[1], index: 8, kind: input, shape index: {}]
  %s9 = inlined_call_operand.hbm [shape: f32[8,128], index: 9, kind: output, shape index: {}]
  %s10 = sld [smem:[#allocation0]]
  $region78: #{tpu_custom_call.1} parent=0
    _
  %s12 = ssub.s32 1, %s10
  %s13 = scalar_select 0, %s12, %s10
  %14 = sst [smem:[#allocation2]] %s8
  $region1: #{tpu_custom_call.1} parent=0
    #allocation3 [shape = 'u8[32768]{0}', space=vmem, size = 0x8000, scoped, tag = 'input window, operand 0, single buffered']
    #allocation4 [shape = 's32[1]{0}', space=sflag, size = 0x4, scoped, tag = 'scoped memory for tpu_custom_call.1']
    #allocation5 [shape = 's32[1]{0}', space=sflag, size = 0x4, scoped, tag = 'scoped memory for tpu_custom_call.1']
    #allocation6 [shape = 's32[1]{0}', space=sflag, size = 0x4, scoped, tag = 'scoped memory for tpu_custom_call.1']
    #allocation7 [shape = 'u8[512]{0}', space=smem, size = 0x200, scoped, tag = 'input window, operand 1, single buffered']
    #allocation8 [shape = 'u8[512]{0}', space=smem, size = 0x200, scoped, tag = 'input window, operand 2, single buffered']
    #allocation9 [shape = 's32[1]{0}', space=sflag, size = 0x4, scoped, tag = 'scoped memory for tpu_custom_call.1']
    #allocation10 [shape = 'u8[512]{0}', space=smem, size = 0x200, scoped, tag = 'input window, operand 3, single buffered']
    #allocation11 [shape = 'u8[512]{0}', space=smem, size = 0x200, scoped, tag = 'input window, operand 4, single buffered']
    #allocation12 [shape = 's32[1]{0}', space=sflag, size = 0x4, scoped, tag = 'scoped memory for tpu_custom_call.1']
    #allocation13 [shape = 'u8[512]{0}', space=smem, size = 0x200, scoped, tag = 'input window, operand 5, single buffered']
    #allocation14 [shape = 'u8[512]{0}', space=smem, size = 0x200, scoped, tag = 'input window, operand 6, single buffered']
    #allocation15 [shape = 's32[1]{0}', space=sflag, size = 0x4, scoped, tag = 'scoped memory for tpu_custom_call.1']
    #allocation16 [shape = 'u8[512]{0}', space=smem, size = 0x200, scoped, tag = 'input window, operand 7, single buffered']
    #allocation17 [shape = 'u8[4096]{0}', space=vmem, size = 0x1000, scoped, tag = 'output window, operand 0, single buffered']
    %15 = vsyncpa [#allocation4], 0
    %16 = vsyncpa [#allocation6], 0
    %17 = vsyncpa [#allocation9], 0
    %18 = vsyncpa [#allocation12], 0
    %19 = vsyncpa [#allocation15], 0
    %20 = vsyncpa [#allocation5], 0
    // Predicated region
    $region2: #{tpu_custom_call.1} parent=1 // pred_check
      _
    $region3: #{tpu_custom_call.1} parent=1 // pred_check_branch
      %22 = sbr.rel (0) target = $region5
    $region4: #{tpu_custom_call.1} parent=1 // pred_region
      %s24 = ssub.s32 1024, 1024
      %25 = vsyncadd [#allocation4], %s24
      %s26 = sshll.u32 [#allocation3], 4
      %s27 = int_to_ptr.vmem [resolvable:$true] %s26
      %32 = dma.hbm_to_vmem [thread:$0]  %s0, 1024, %s27, [#allocation4], 128, 128, 8
    $region5: #{tpu_custom_call.1} parent=1 // pred_fallthru
      _
    // Predicated region
    $region6: #{tpu_custom_call.1} parent=1 // pred_check
      _
    $region7: #{tpu_custom_call.1} parent=1 // pred_check_branch
      %34 = sbr.rel (0) target = $region9
    $region8: #{tpu_custom_call.1} parent=1 // pred_region
      %s36 = ssub.s32 16, 16
      %37 = vsyncadd [#allocation6], %s36
      %s39 = sshll.u32 %s1, 4
      %s40 = int_to_ptr.vmem [resolvable:$true] %s39
      %42 = dma.vmem_to_smem %s40, 16, [#allocation7], [#allocation6]
    $region9: #{tpu_custom_call.1} parent=1 // pred_fallthru
      _
    // Predicated region
    $region10: #{tpu_custom_call.1} parent=1 // pred_check
      _
    $region11: #{tpu_custom_call.1} parent=1 // pred_check_branch
      %44 = sbr.rel (0) target = $region13
    $region12: #{tpu_custom_call.1} parent=1 // pred_region
      %s46 = ssub.s32 16, 16
      %47 = vsyncadd [#allocation9], %s46
      %s49 = sshll.u32 %s2, 4
      %s50 = int_to_ptr.vmem [resolvable:$true] %s49
      %52 = dma.vmem_to_smem %s50, 16, [#allocation8], [#allocation9]
    $region13: #{tpu_custom_call.1} parent=1 // pred_fallthru
      _
    // Predicated region
    $region14: #{tpu_custom_call.1} parent=1 // pred_check
      _
    $region15: #{tpu_custom_call.1} parent=1 // pred_check_branch
      %54 = sbr.rel (0) target = $region17
    $region16: #{tpu_custom_call.1} parent=1 // pred_region
      %s56 = ssub.s32 16, 16
      %57 = vsyncadd [#allocation9], %s56
      %s59 = sshll.u32 %s3, 4
      %s60 = int_to_ptr.vmem [resolvable:$true] %s59
      %62 = dma.vmem_to_smem %s60, 16, [#allocation10], [#allocation9]
    $region17: #{tpu_custom_call.1} parent=1 // pred_fallthru
      _
    // Predicated region
    $region18: #{tpu_custom_call.1} parent=1 // pred_check
      _
    $region19: #{tpu_custom_call.1} parent=1 // pred_check_branch
      %64 = sbr.rel (0) target = $region21
    $region20: #{tpu_custom_call.1} parent=1 // pred_region
      %s66 = ssub.s32 16, 16
      %67 = vsyncadd [#allocation12], %s66
      %s69 = sshll.u32 %s4, 4
      %s70 = int_to_ptr.vmem [resolvable:$true] %s69
      %72 = dma.vmem_to_smem %s70, 16, [#allocation11], [#allocation12]
    $region21: #{tpu_custom_call.1} parent=1 // pred_fallthru
      _
    // Predicated region
    $region22: #{tpu_custom_call.1} parent=1 // pred_check
      _
    $region23: #{tpu_custom_call.1} parent=1 // pred_check_branch
      %74 = sbr.rel (0) target = $region25
    $region24: #{tpu_custom_call.1} parent=1 // pred_region
      %s76 = ssub.s32 16, 16
      %77 = vsyncadd [#allocation12], %s76
      %s79 = sshll.u32 %s5, 4
      %s80 = int_to_ptr.vmem [resolvable:$true] %s79
      %82 = dma.vmem_to_smem %s80, 16, [#allocation13], [#allocation12]
    $region25: #{tpu_custom_call.1} parent=1 // pred_fallthru
      _
    // Predicated region
    $region26: #{tpu_custom_call.1} parent=1 // pred_check
      _
    $region27: #{tpu_custom_call.1} parent=1 // pred_check_branch
      %84 = sbr.rel (0) target = $region29
    $region28: #{tpu_custom_call.1} parent=1 // pred_region
      %s86 = ssub.s32 16, 16
      %87 = vsyncadd [#allocation15], %s86
      %s89 = sshll.u32 %s6, 4
      %s90 = int_to_ptr.vmem [resolvable:$true] %s89
      %92 = dma.vmem_to_smem %s90, 16, [#allocation14], [#allocation15]
    $region29: #{tpu_custom_call.1} parent=1 // pred_fallthru
      _
    // Predicated region
    $region30: #{tpu_custom_call.1} parent=1 // pred_check
      _
    $region31: #{tpu_custom_call.1} parent=1 // pred_check_branch
      %94 = sbr.rel (0) target = $region33
    $region32: #{tpu_custom_call.1} parent=1 // pred_region
      %s96 = ssub.s32 16, 16
      %97 = vsyncadd [#allocation15], %s96
      %s99 = sshll.u32 %s7, 4
      %s100 = int_to_ptr.vmem [resolvable:$true] %s99
      %102 = dma.vmem_to_smem %s100, 16, [#allocation16], [#allocation15]
    $region33: #{tpu_custom_call.1} parent=1 // pred_fallthru
      _
    // Predicated region
    $region34: #{tpu_custom_call.1} parent=1 // pred_check
      _
    $region35: #{tpu_custom_call.1} parent=1 // pred_check_branch
      %104 = sbr.rel (0) target = $region37
    $region36: #{tpu_custom_call.1} parent=1 // pred_region
      _
    $region37: #{tpu_custom_call.1} parent=1 // pred_fallthru
      _
    // Predicated region
    $region38: #{tpu_custom_call.1} parent=1 // pred_check
      _
    $region39: #{tpu_custom_call.1} parent=1 // pred_check_branch
      %106 = sbr.rel (0) target = $region41
    $region40: #{tpu_custom_call.1} parent=1 // pred_region
      %107 = dma.done [#allocation4], 1024
    $region41: #{tpu_custom_call.1} parent=1 // pred_fallthru
      _
    // Predicated region
    $region42: #{tpu_custom_call.1} parent=1 // pred_check
      _
    $region43: #{tpu_custom_call.1} parent=1 // pred_check_branch
      %109 = sbr.rel (0) target = $region45
    $region44: #{tpu_custom_call.1} parent=1 // pred_region
      %110 = dma.done [#allocation6], 16
    $region45: #{tpu_custom_call.1} parent=1 // pred_fallthru
      _
    // Predicated region
    $region46: #{tpu_custom_call.1} parent=1 // pred_check
      _
    $region47: #{tpu_custom_call.1} parent=1 // pred_check_branch
      %112 = sbr.rel (0) target = $region49
    $region48: #{tpu_custom_call.1} parent=1 // pred_region
      %113 = dma.done [#allocation9], 16
    $region49: #{tpu_custom_call.1} parent=1 // pred_fallthru
      _
    // Predicated region
    $region50: #{tpu_custom_call.1} parent=1 // pred_check
      _
    $region51: #{tpu_custom_call.1} parent=1 // pred_check_branch
      %115 = sbr.rel (0) target = $region53
    $region52: #{tpu_custom_call.1} parent=1 // pred_region
      %116 = dma.done [#allocation9], 16
    $region53: #{tpu_custom_call.1} parent=1 // pred_fallthru
      _
    // Predicated region
    $region54: #{tpu_custom_call.1} parent=1 // pred_check
      _
    $region55: #{tpu_custom_call.1} parent=1 // pred_check_branch
      %118 = sbr.rel (0) target = $region57
    $region56: #{tpu_custom_call.1} parent=1 // pred_region
      %119 = dma.done [#allocation12], 16
    $region57: #{tpu_custom_call.1} parent=1 // pred_fallthru
      _
    // Predicated region
    $region58: #{tpu_custom_call.1} parent=1 // pred_check
      _
    $region59: #{tpu_custom_call.1} parent=1 // pred_check_branch
      %121 = sbr.rel (0) target = $region61
    $region60: #{tpu_custom_call.1} parent=1 // pred_region
      %122 = dma.done [#allocation12], 16
    $region61: #{tpu_custom_call.1} parent=1 // pred_fallthru
      _
    // Predicated region
    $region62: #{tpu_custom_call.1} parent=1 // pred_check
      _
    $region63: #{tpu_custom_call.1} parent=1 // pred_check_branch
      %124 = sbr.rel (0) target = $region65
    $region64: #{tpu_custom_call.1} parent=1 // pred_region
      %125 = dma.done [#allocation15], 16
    $region65: #{tpu_custom_call.1} parent=1 // pred_fallthru
      _
    // Predicated region
    $region66: #{tpu_custom_call.1} parent=1 // pred_check
      _
    $region67: #{tpu_custom_call.1} parent=1 // pred_check_branch
      %127 = sbr.rel (0) target = $region69
    $region68: #{tpu_custom_call.1} parent=1 // pred_region
      %128 = dma.done [#allocation15], 16
    $region69: #{tpu_custom_call.1} parent=1 // pred_fallthru
      _
    %129 = sfence
    %v130 = vld [vmem:[#allocation3] sm:$0xff]
    %s131 = scalar_lea.vmem [#allocation3], 8
    %v132 = vld [vmem:[%s131] sm:$0xff]
    %s133 = scalar_lea.vmem [#allocation3], 16
    %v134 = vld [vmem:[%s133] sm:$0xff]
    %s135 = scalar_lea.vmem [#allocation3], 24
    %v136 = vld [vmem:[%s135] sm:$0xff]
    %s137 = scalar_lea.vmem [#allocation3], 32
    %v138 = vld [vmem:[%s137] sm:$0xff]
    %s139 = scalar_lea.vmem [#allocation3], 40
    %v140 = vld [vmem:[%s139] sm:$0xff]
    %s141 = scalar_lea.vmem [#allocation3], 48
    %v142 = vld [vmem:[%s141] sm:$0xff]
    %s143 = scalar_lea.vmem [#allocation3], 56
    %v144 = vld [vmem:[%s143] sm:$0xff]
    %s145 = sld [smem:[#allocation7]]
    %v146 = vstv %s145
    %v147 = vmul.f32 %v130, %v146
    %s148 = sld [smem:[#allocation7 + $0x1]]
    %v149 = vstv %s148
    %v150 = vmul.f32 %v132, %v149
    %v151 = vadd.f32 %v147, %v150
    %s152 = sld [smem:[#allocation7 + $0x2]]
    %v153 = vstv %s152
    %v154 = vmul.f32 %v134, %v153
    %v155 = vadd.f32 %v151, %v154
    %s156 = sld [smem:[#allocation7 + $0x3]]
    %v157 = vstv %s156
    %v158 = vmul.f32 %v136, %v157
    %v159 = vadd.f32 %v155, %v158
    %s160 = sld [smem:[#allocation7 + $0x4]]
    %v161 = vstv %s160
    %v162 = vmul.f32 %v138, %v161
    %v163 = vadd.f32 %v159, %v162
    %s164 = sld [smem:[#allocation7 + $0x5]]
    %v165 = vstv %s164
    %v166 = vmul.f32 %v140, %v165
    %v167 = vadd.f32 %v163, %v166
    %s168 = sld [smem:[#allocation7 + $0x6]]
    %v169 = vstv %s168
    %v170 = vmul.f32 %v142, %v169
    %v171 = vadd.f32 %v167, %v170
    %s172 = sld [smem:[#allocation7 + $0x7]]
    %v173 = vstv %s172
    %v174 = vmul.f32 %v144, %v173
    %v175 = vadd.f32 %v171, %v174
    %s176 = sld [smem:[#allocation8]]
    %v177 = vstv %s176
    %v178 = vadd.f32 %v175, %v177
    %v179 = vmul.f32 %v178, 0.5
    %v180 = vtanh.pop %v179
    %v181 = vmul.f32 %v180, 0.5
    %v182 = vadd.f32 %v181, 0.5
    %s183 = sld [smem:[#allocation7 + $0x8]]
    %v184 = vstv %s183
    %v185 = vmul.f32 %v130, %v184
    %s186 = sld [smem:[#allocation7 + $0x9]]
    %v187 = vstv %s186
    %v188 = vmul.f32 %v132, %v187
    %v189 = vadd.f32 %v185, %v188
    %s190 = sld [smem:[#allocation7 + $0xa]]
    %v191 = vstv %s190
    %v192 = vmul.f32 %v134, %v191
    %v193 = vadd.f32 %v189, %v192
    %s194 = sld [smem:[#allocation7 + $0xb]]
    %v195 = vstv %s194
    %v196 = vmul.f32 %v136, %v195
    %v197 = vadd.f32 %v193, %v196
    %s198 = sld [smem:[#allocation7 + $0xc]]
    %v199 = vstv %s198
    %v200 = vmul.f32 %v138, %v199
    %v201 = vadd.f32 %v197, %v200
    %s202 = sld [smem:[#allocation7 + $0xd]]
    %v203 = vstv %s202
    %v204 = vmul.f32 %v140, %v203
    %v205 = vadd.f32 %v201, %v204
    %s206 = sld [smem:[#allocation7 + $0xe]]
    %v207 = vstv %s206
    %v208 = vmul.f32 %v142, %v207
    %v209 = vadd.f32 %v205, %v208
    %s210 = sld [smem:[#allocation7 + $0xf]]
    %v211 = vstv %s210
    %v212 = vmul.f32 %v144, %v211
    %v213 = vadd.f32 %v209, %v212
    %s214 = sld [smem:[#allocation8 + $0x1]]
    %v215 = vstv %s214
    %v216 = vadd.f32 %v213, %v215
    %v217 = vmul.f32 %v216, 0.5
    %v218 = vtanh.pop %v217
    %v219 = vmul.f32 %v218, 0.5
    %v220 = vadd.f32 %v219, 0.5
    %s221 = sld [smem:[#allocation7 + $0x10]]
    %v222 = vstv %s221
    %v223 = vmul.f32 %v130, %v222
    %s224 = sld [smem:[#allocation7 + $0x11]]
    %v225 = vstv %s224
    %v226 = vmul.f32 %v132, %v225
    %v227 = vadd.f32 %v223, %v226
    %s228 = sld [smem:[#allocation7 + $0x12]]
    %v229 = vstv %s228
    %v230 = vmul.f32 %v134, %v229
    %v231 = vadd.f32 %v227, %v230
    %s232 = sld [smem:[#allocation7 + $0x13]]
    %v233 = vstv %s232
    %v234 = vmul.f32 %v136, %v233
    %v235 = vadd.f32 %v231, %v234
    %s236 = sld [smem:[#allocation7 + $0x14]]
    %v237 = vstv %s236
    %v238 = vmul.f32 %v138, %v237
    %v239 = vadd.f32 %v235, %v238
    %s240 = sld [smem:[#allocation7 + $0x15]]
    %v241 = vstv %s240
    %v242 = vmul.f32 %v140, %v241
    %v243 = vadd.f32 %v239, %v242
    %s244 = sld [smem:[#allocation7 + $0x16]]
    %v245 = vstv %s244
    %v246 = vmul.f32 %v142, %v245
    %v247 = vadd.f32 %v243, %v246
    %s248 = sld [smem:[#allocation7 + $0x17]]
    %v249 = vstv %s248
    %v250 = vmul.f32 %v144, %v249
    %v251 = vadd.f32 %v247, %v250
    %s252 = sld [smem:[#allocation8 + $0x2]]
    %v253 = vstv %s252
    %v254 = vadd.f32 %v251, %v253
    %v255 = vmul.f32 %v254, 0.5
    %v256 = vtanh.pop %v255
    %v257 = vmul.f32 %v256, 0.5
    %v258 = vadd.f32 %v257, 0.5
    %s259 = sld [smem:[#allocation7 + $0x18]]
    %v260 = vstv %s259
    %v261 = vmul.f32 %v130, %v260
    %s262 = sld [smem:[#allocation7 + $0x19]]
    %v263 = vstv %s262
    %v264 = vmul.f32 %v132, %v263
    %v265 = vadd.f32 %v261, %v264
    %s266 = sld [smem:[#allocation7 + $0x1a]]
    %v267 = vstv %s266
    %v268 = vmul.f32 %v134, %v267
    %v269 = vadd.f32 %v265, %v268
    %s270 = sld [smem:[#allocation7 + $0x1b]]
    %v271 = vstv %s270
    %v272 = vmul.f32 %v136, %v271
    %v273 = vadd.f32 %v269, %v272
    %s274 = sld [smem:[#allocation7 + $0x1c]]
    %v275 = vstv %s274
    %v276 = vmul.f32 %v138, %v275
    %v277 = vadd.f32 %v273, %v276
    %s278 = sld [smem:[#allocation7 + $0x1d]]
    %v279 = vstv %s278
    %v280 = vmul.f32 %v140, %v279
    %v281 = vadd.f32 %v277, %v280
    %s282 = sld [smem:[#allocation7 + $0x1e]]
    %v283 = vstv %s282
    %v284 = vmul.f32 %v142, %v283
    %v285 = vadd.f32 %v281, %v284
    %s286 = sld [smem:[#allocation7 + $0x1f]]
    %v287 = vstv %s286
    %v288 = vmul.f32 %v144, %v287
    %v289 = vadd.f32 %v285, %v288
    %s290 = sld [smem:[#allocation8 + $0x3]]
    %v291 = vstv %s290
    %v292 = vadd.f32 %v289, %v291
    %v293 = vmul.f32 %v292, 0.5
    %v294 = vtanh.pop %v293
    %v295 = vmul.f32 %v294, 0.5
    %v296 = vadd.f32 %v295, 0.5
    %s297 = sld [smem:[#allocation7 + $0x20]]
    %v298 = vstv %s297
    %v299 = vmul.f32 %v130, %v298
    %s300 = sld [smem:[#allocation7 + $0x21]]
    %v301 = vstv %s300
    %v302 = vmul.f32 %v132, %v301
    %v303 = vadd.f32 %v299, %v302
    %s304 = sld [smem:[#allocation7 + $0x22]]
    %v305 = vstv %s304
    %v306 = vmul.f32 %v134, %v305
    %v307 = vadd.f32 %v303, %v306
    %s308 = sld [smem:[#allocation7 + $0x23]]
    %v309 = vstv %s308
    %v310 = vmul.f32 %v136, %v309
    %v311 = vadd.f32 %v307, %v310
    %s312 = sld [smem:[#allocation7 + $0x24]]
    %v313 = vstv %s312
    %v314 = vmul.f32 %v138, %v313
    %v315 = vadd.f32 %v311, %v314
    %s316 = sld [smem:[#allocation7 + $0x25]]
    %v317 = vstv %s316
    %v318 = vmul.f32 %v140, %v317
    %v319 = vadd.f32 %v315, %v318
    %s320 = sld [smem:[#allocation7 + $0x26]]
    %v321 = vstv %s320
    %v322 = vmul.f32 %v142, %v321
    %v323 = vadd.f32 %v319, %v322
    %s324 = sld [smem:[#allocation7 + $0x27]]
    %v325 = vstv %s324
    %v326 = vmul.f32 %v144, %v325
    %v327 = vadd.f32 %v323, %v326
    %s328 = sld [smem:[#allocation8 + $0x4]]
    %v329 = vstv %s328
    %v330 = vadd.f32 %v327, %v329
    %v331 = vmul.f32 %v330, 0.5
    %v332 = vtanh.pop %v331
    %v333 = vmul.f32 %v332, 0.5
    %v334 = vadd.f32 %v333, 0.5
    %s335 = sld [smem:[#allocation7 + $0x28]]
    %v336 = vstv %s335
    %v337 = vmul.f32 %v130, %v336
    %s338 = sld [smem:[#allocation7 + $0x29]]
    %v339 = vstv %s338
    %v340 = vmul.f32 %v132, %v339
    %v341 = vadd.f32 %v337, %v340
    %s342 = sld [smem:[#allocation7 + $0x2a]]
    %v343 = vstv %s342
    %v344 = vmul.f32 %v134, %v343
    %v345 = vadd.f32 %v341, %v344
    %s346 = sld [smem:[#allocation7 + $0x2b]]
    %v347 = vstv %s346
    %v348 = vmul.f32 %v136, %v347
    %v349 = vadd.f32 %v345, %v348
    %s350 = sld [smem:[#allocation7 + $0x2c]]
    %v351 = vstv %s350
    %v352 = vmul.f32 %v138, %v351
    %v353 = vadd.f32 %v349, %v352
    %s354 = sld [smem:[#allocation7 + $0x2d]]
    %v355 = vstv %s354
    %v356 = vmul.f32 %v140, %v355
    %v357 = vadd.f32 %v353, %v356
    %s358 = sld [smem:[#allocation7 + $0x2e]]
    %v359 = vstv %s358
    %v360 = vmul.f32 %v142, %v359
    %v361 = vadd.f32 %v357, %v360
    %s362 = sld [smem:[#allocation7 + $0x2f]]
    %v363 = vstv %s362
    %v364 = vmul.f32 %v144, %v363
    %v365 = vadd.f32 %v361, %v364
    %s366 = sld [smem:[#allocation8 + $0x5]]
    %v367 = vstv %s366
    %v368 = vadd.f32 %v365, %v367
    %v369 = vmul.f32 %v368, 0.5
    %v370 = vtanh.pop %v369
    %v371 = vmul.f32 %v370, 0.5
    %v372 = vadd.f32 %v371, 0.5
    %s373 = sld [smem:[#allocation10]]
    %v374 = vstv %s373
    %v375 = vmul.f32 %v182, %v374
    %s376 = sld [smem:[#allocation10 + $0x1]]
    %v377 = vstv %s376
    %v378 = vmul.f32 %v220, %v377
    %v379 = vadd.f32 %v375, %v378
    %s380 = sld [smem:[#allocation10 + $0x2]]
    %v381 = vstv %s380
    %v382 = vmul.f32 %v258, %v381
    %v383 = vadd.f32 %v379, %v382
    %s384 = sld [smem:[#allocation10 + $0x3]]
    %v385 = vstv %s384
    %v386 = vmul.f32 %v296, %v385
    %v387 = vadd.f32 %v383, %v386
    %s388 = sld [smem:[#allocation10 + $0x4]]
    %v389 = vstv %s388
    %v390 = vmul.f32 %v334, %v389
    %v391 = vadd.f32 %v387, %v390
    %s392 = sld [smem:[#allocation10 + $0x5]]
    %v393 = vstv %s392
    %v394 = vmul.f32 %v372, %v393
    %v395 = vadd.f32 %v391, %v394
    %s396 = sld [smem:[#allocation11]]
    %v397 = vstv %s396
    %v398 = vadd.f32 %v395, %v397
    %v399 = vmul.f32 %v398, 0.5
    %v400 = vtanh.pop %v399
    %v401 = vmul.f32 %v400, 0.5
    %v402 = vadd.f32 %v401, 0.5
    %s403 = sld [smem:[#allocation10 + $0x6]]
    %v404 = vstv %s403
    %v405 = vmul.f32 %v182, %v404
    %s406 = sld [smem:[#allocation10 + $0x7]]
    %v407 = vstv %s406
    %v408 = vmul.f32 %v220, %v407
    %v409 = vadd.f32 %v405, %v408
    %s410 = sld [smem:[#allocation10 + $0x8]]
    %v411 = vstv %s410
    %v412 = vmul.f32 %v258, %v411
    %v413 = vadd.f32 %v409, %v412
    %s414 = sld [smem:[#allocation10 + $0x9]]
    %v415 = vstv %s414
    %v416 = vmul.f32 %v296, %v415
    %v417 = vadd.f32 %v413, %v416
    %s418 = sld [smem:[#allocation10 + $0xa]]
    %v419 = vstv %s418
    %v420 = vmul.f32 %v334, %v419
    %v421 = vadd.f32 %v417, %v420
    %s422 = sld [smem:[#allocation10 + $0xb]]
    %v423 = vstv %s422
    %v424 = vmul.f32 %v372, %v423
    %v425 = vadd.f32 %v421, %v424
    %s426 = sld [smem:[#allocation11 + $0x1]]
    %v427 = vstv %s426
    %v428 = vadd.f32 %v425, %v427
    %v429 = vmul.f32 %v428, 0.5
    %v430 = vtanh.pop %v429
    %v431 = vmul.f32 %v430, 0.5
    %v432 = vadd.f32 %v431, 0.5
    %s433 = sld [smem:[#allocation10 + $0xc]]
    %v434 = vstv %s433
    %v435 = vmul.f32 %v182, %v434
    %s436 = sld [smem:[#allocation10 + $0xd]]
    %v437 = vstv %s436
    %v438 = vmul.f32 %v220, %v437
    %v439 = vadd.f32 %v435, %v438
    %s440 = sld [smem:[#allocation10 + $0xe]]
    %v441 = vstv %s440
    %v442 = vmul.f32 %v258, %v441
    %v443 = vadd.f32 %v439, %v442
    %s444 = sld [smem:[#allocation10 + $0xf]]
    %v445 = vstv %s444
    %v446 = vmul.f32 %v296, %v445
    %v447 = vadd.f32 %v443, %v446
    %s448 = sld [smem:[#allocation10 + $0x10]]
    %v449 = vstv %s448
    %v450 = vmul.f32 %v334, %v449
    %v451 = vadd.f32 %v447, %v450
    %s452 = sld [smem:[#allocation10 + $0x11]]
    %v453 = vstv %s452
    %v454 = vmul.f32 %v372, %v453
    %v455 = vadd.f32 %v451, %v454
    %s456 = sld [smem:[#allocation11 + $0x2]]
    %v457 = vstv %s456
    %v458 = vadd.f32 %v455, %v457
    %v459 = vmul.f32 %v458, 0.5
    %v460 = vtanh.pop %v459
    %v461 = vmul.f32 %v460, 0.5
    %v462 = vadd.f32 %v461, 0.5
    %s463 = sld [smem:[#allocation10 + $0x12]]
    %v464 = vstv %s463
    %v465 = vmul.f32 %v182, %v464
    %s466 = sld [smem:[#allocation10 + $0x13]]
    %v467 = vstv %s466
    %v468 = vmul.f32 %v220, %v467
    %v469 = vadd.f32 %v465, %v468
    %s470 = sld [smem:[#allocation10 + $0x14]]
    %v471 = vstv %s470
    %v472 = vmul.f32 %v258, %v471
    %v473 = vadd.f32 %v469, %v472
    %s474 = sld [smem:[#allocation10 + $0x15]]
    %v475 = vstv %s474
    %v476 = vmul.f32 %v296, %v475
    %v477 = vadd.f32 %v473, %v476
    %s478 = sld [smem:[#allocation10 + $0x16]]
    %v479 = vstv %s478
    %v480 = vmul.f32 %v334, %v479
    %v481 = vadd.f32 %v477, %v480
    %s482 = sld [smem:[#allocation10 + $0x17]]
    %v483 = vstv %s482
    %v484 = vmul.f32 %v372, %v483
    %v485 = vadd.f32 %v481, %v484
    %s486 = sld [smem:[#allocation11 + $0x3]]
    %v487 = vstv %s486
    %v488 = vadd.f32 %v485, %v487
    %v489 = vmul.f32 %v488, 0.5
    %v490 = vtanh.pop %v489
    %v491 = vmul.f32 %v490, 0.5
    %v492 = vadd.f32 %v491, 0.5
    %s493 = sld [smem:[#allocation13]]
    %v494 = vstv %s493
    %v495 = vmul.f32 %v402, %v494
    %s496 = sld [smem:[#allocation13 + $0x1]]
    %v497 = vstv %s496
    %v498 = vmul.f32 %v432, %v497
    %v499 = vadd.f32 %v495, %v498
    %s500 = sld [smem:[#allocation13 + $0x2]]
    %v501 = vstv %s500
    %v502 = vmul.f32 %v462, %v501
    %v503 = vadd.f32 %v499, %v502
    %s504 = sld [smem:[#allocation13 + $0x3]]
    %v505 = vstv %s504
    %v506 = vmul.f32 %v492, %v505
    %v507 = vadd.f32 %v503, %v506
    %s508 = sld [smem:[#allocation14]]
    %v509 = vstv %s508
    %v510 = vadd.f32 %v507, %v509
    %v511 = vmul.f32 %v510, 0.5
    %v512 = vtanh.pop %v511
    %v513 = vmul.f32 %v512, 0.5
    %v514 = vadd.f32 %v513, 0.5
    %s515 = sld [smem:[#allocation13 + $0x4]]
    %v516 = vstv %s515
    %v517 = vmul.f32 %v402, %v516
    %s518 = sld [smem:[#allocation13 + $0x5]]
    %v519 = vstv %s518
    %v520 = vmul.f32 %v432, %v519
    %v521 = vadd.f32 %v517, %v520
    %s522 = sld [smem:[#allocation13 + $0x6]]
    %v523 = vstv %s522
    %v524 = vmul.f32 %v462, %v523
    %v525 = vadd.f32 %v521, %v524
    %s526 = sld [smem:[#allocation13 + $0x7]]
    %v527 = vstv %s526
    %v528 = vmul.f32 %v492, %v527
    %v529 = vadd.f32 %v525, %v528
    %s530 = sld [smem:[#allocation14 + $0x1]]
    %v531 = vstv %s530
    %v532 = vadd.f32 %v529, %v531
    %v533 = vmul.f32 %v532, 0.5
    %v534 = vtanh.pop %v533
    %v535 = vmul.f32 %v534, 0.5
    %v536 = vadd.f32 %v535, 0.5
    %s537 = sld [smem:[#allocation16]]
    %v538 = vstv %s537
    %v539 = vmul.f32 %v514, %v538
    %s540 = sld [smem:[#allocation16 + $0x1]]
    %v541 = vstv %s540
    %v542 = vmul.f32 %v536, %v541
    %v543 = vadd.f32 %v539, %v542
    %s544 = sld [smem:[#allocation2]]
    %v545 = vstv %s544
    %v546 = vadd.f32 %v543, %v545
    %v547 = vmul.f32 %v546, 0.5
    %v548 = vtanh.pop %v547
    %v549 = vmul.f32 %v548, 0.5
    %v550 = vadd.f32 %v549, 0.5
    %551 = vst [vmem:[#allocation17] sm:$0xff] %v550
    // Predicated region
    $region70: #{tpu_custom_call.1} parent=1 // pred_check
      _
    $region71: #{tpu_custom_call.1} parent=1 // pred_check_branch
      %553 = sbr.rel (0) target = $region73
    $region72: #{tpu_custom_call.1} parent=1 // pred_region
      %s555 = ssub.s32 128, 128
      %556 = vsyncadd [#allocation5], %s555
      %s558 = sshll.u32 [#allocation17], 4
      %s559 = int_to_ptr.vmem [resolvable:$true] %s558
      %561 = dma.vmem_to_hbm [thread:$0]  %s559, 128, %s9, [#allocation5]
    $region73: #{tpu_custom_call.1} parent=1 // pred_fallthru
      _
    // Predicated region
    $region74: #{tpu_custom_call.1} parent=1 // pred_check
      _
    $region75: #{tpu_custom_call.1} parent=1 // pred_check_branch
      %563 = sbr.rel (0) target = $region77
    $region76: #{tpu_custom_call.1} parent=1 // pred_region
      %564 = dma.done [#allocation5], 128
    $region77: #{tpu_custom_call.1} parent=1 // pred_fallthru
      _
    %565 = vsyncpa [#allocation4], 1
    %566 = vsyncpa [#allocation5], 1
    %567 = vsyncpa [#allocation6], 1
    %568 = vsyncpa [#allocation9], 1
    %569 = vsyncpa [#allocation12], 1
    %570 = vsyncpa [#allocation15], 1

</llo_original>
